<compile_context>
chip_gen: v7x
topology: tpu7x:2x2x1
jax: 0.10.0
libtpu: 0.0.40
codegen_flags: <defaults>
</compile_context>

<pallas_src>
import functools

import jax
import jax.numpy as jnp
from jax.experimental import pallas as pl
from jax.experimental.pallas import tpu as pltpu

FEATURE_DIM = 128
W_OBJECTNESS = 1.0        # config.weight.objectness
W_GRASPNESS = 10.0        # config.weight.graspness
MAX_TILE_N = 16384        # feat slab (C x tile_n f32) = 8 MiB at C=128
VMEM_LIMIT_BYTES = 40 * 1024 * 1024   # above v5e's 16 MiB default scoped limit


def _graspness_kernel(n_total, tiles_per_split, needs_mask,
                      pts_ref,            # (1, 8, Tn) bf16: [x;y;z;1;0;0;0;0]
                      gt_ref,             # (1, 2, Tn) f32:  [gt_obj; gt_grasp]
                      wb_ref,             # (C, 8)    bf16:  [Wb^T | bb | 0...]
                      wgt_ref,            # (3, C)    bf16
                      bg_ref,             # (3, 1)    f32
                      out_ref,            # (1, 1, 8, 1) f32 raw sums
                      acc_ref):           # (8, 1) f32 VMEM scratch
    s = pl.program_id(0)                  # N-split (megacore) axis
    t = pl.program_id(2)                  # N-tile (reduction) axis
    tile_n = pts_ref.shape[2]

    @pl.when(t == 0)
    def _():
        acc_ref[...] = jnp.zeros_like(acc_ref)

    # ---- backbone stand-in on the MXU (bias folded into the ones row) ----
    feat = jnp.tanh(
        jnp.dot(wb_ref[...], pts_ref[0],
                preferred_element_type=jnp.float32))              # (C, Tn) f32

    # ---- graspable head: (3, C) bf16 @ (C, Tn) bf16 -> f32 on the MXU ----
    g = (jnp.dot(wgt_ref[...], feat.astype(jnp.bfloat16),
                 preferred_element_type=jnp.float32)
         + bg_ref[...])                                           # (3, Tn) f32
    l0 = g[0:1, :]
    l1 = g[1:2, :]
    graspness = g[2:3, :]

    gt_obj = gt_ref[0, 0:1, :]                                    # (1, Tn) {0,1}
    gt_grasp = gt_ref[0, 1:2, :]                                  # (1, Tn)

    # ---- per-point loss / metric terms, all lane-dense (1, Tn) f32 ----
    m = jnp.maximum(l0, l1)
    lse = m + jnp.log(jnp.exp(l0 - m) + jnp.exp(l1 - m))
    ce = lse - jnp.where(gt_obj > 0.5, l1, l0)                    # 2-class CE

    d = (graspness - gt_grasp) * gt_obj
    ad = jnp.abs(d)
    sl1 = jnp.where(ad < 1.0, 0.5 * d * d, ad - 0.5)              # SmoothL1

    pred = (l1 > l0).astype(jnp.float32)                          # argmax of 2
    correct = (pred == gt_obj).astype(jnp.float32)

    if needs_mask:
        # only emitted when N is not tile-aligned (garbage in the padded
        # block region must be selected away, not multiplied, to kill NaNs)
        lane = jax.lax.broadcasted_iota(jnp.int32, (1, tile_n), 1)
        valid = ((s * tiles_per_split + t) * tile_n + lane) < n_total
        ce = jnp.where(valid, ce, 0.0)
        sl1 = jnp.where(valid, sl1, 0.0)
        ad = jnp.where(valid, ad, 0.0)
        gt_obj = jnp.where(valid, gt_obj, 0.0)
        correct = jnp.where(valid, correct, 0.0)

    # ---- five independent cross-lane reduces (XLU has slack) ----
    sums5 = jnp.concatenate(
        [jnp.sum(ce, axis=-1, keepdims=True),
         jnp.sum(sl1, axis=-1, keepdims=True),
         jnp.sum(ad, axis=-1, keepdims=True),
         jnp.sum(gt_obj, axis=-1, keepdims=True),
         jnp.sum(correct, axis=-1, keepdims=True)], axis=0)       # (5, 1)
    acc_ref[0:5, :] += sums5

    @pl.when(t == tiles_per_split - 1)
    def _():
        out_ref[0, 0] = acc_ref[...]                              # raw sums


def graspness_sample_forward(points, gt_objectness, gt_graspness,
                             has_graspness, params, *, max_tile_n=MAX_TILE_N):
    """points: (B,N,3); gt_objectness: (B,N) {0,1}; gt_graspness: (B,N);
    has_graspness: (B,1).  Returns (scalar loss, result_dict of (B,) arrays)."""
    B, N, _ = points.shape
    C = params["wb"].shape[1]

    tile_n = N if N <= max_tile_n else max_tile_n
    num_nt = pl.cdiv(N, tile_n)
    # megacore fallback: with B == 1, split N over a leading "parallel" axis
    n_split = 2 if (B == 1 and num_nt >= 2 and num_nt % 2 == 0) else 1
    tiles_per_split = num_nt // n_split
    needs_mask = (num_nt * tile_n != N)

    # ---- host-side layout plumbing (see TODO about producing this upstream) ----
    pts_t = jnp.transpose(points.astype(jnp.float32), (0, 2, 1))        # (B,3,N)
    pts_aug = jnp.concatenate(
        [pts_t, jnp.ones((B, 1, N), jnp.float32),
         jnp.zeros((B, 4, N), jnp.float32)], axis=1).astype(jnp.bfloat16)  # (B,8,N)
    gt = jnp.stack([gt_objectness.astype(jnp.float32),
                    gt_graspness.astype(jnp.float32)], axis=1)          # (B,2,N)

    wb = params["wb"].astype(jnp.float32)                               # (3,C)
    bb = params["bb"].astype(jnp.float32).reshape(C, 1)                 # (C,1)
    wb_aug = jnp.concatenate(
        [jnp.transpose(wb), bb, jnp.zeros((C, 4), jnp.float32)],
        axis=1).astype(jnp.bfloat16)                                    # (C,8)
    wgt = jnp.transpose(params["wg"].astype(jnp.float32)).astype(jnp.bfloat16)  # (3,C)
    bg = params["bg"].astype(jnp.float32).reshape(3, 1)                 # (3,1)

    kernel = functools.partial(_graspness_kernel, N, tiles_per_split, needs_mask)

    out = pl.pallas_call(
        kernel,
        out_shape=jax.ShapeDtypeStruct((n_split, B, 8, 1), jnp.float32),
        grid_spec=pltpu.PrefetchScalarGridSpec(
            num_scalar_prefetch=0,
            grid=(n_split, B, tiles_per_split),   # reduction (N-tile) axis last
            in_specs=[
                pl.BlockSpec((1, 8, tile_n),
                             lambda s, b, t: (b, 0, s * tiles_per_split + t)),
                pl.BlockSpec((1, 2, tile_n),
                             lambda s, b, t: (b, 0, s * tiles_per_split + t)),
                pl.BlockSpec((C, 8), lambda s, b, t: (0, 0)),
                pl.BlockSpec((3, C), lambda s, b, t: (0, 0)),
                pl.BlockSpec((3, 1), lambda s, b, t: (0, 0)),
            ],
            out_specs=pl.BlockSpec((1, 1, 8, 1), lambda s, b, t: (s, b, 0, 0)),
            scratch_shapes=[pltpu.VMEM((8, 1), jnp.float32)],
        ),
        compiler_params=pltpu.CompilerParams(
            dimension_semantics=("parallel", "parallel", "arbitrary"),
            vmem_limit_bytes=VMEM_LIMIT_BYTES),
    )(pts_aug, gt, wb_aug, wgt, bg)

    # ---- trivial combine + divides on (B,) scalars (outside the kernel) ----
    sums = out[..., 0].sum(axis=0)                    # (B, 8) over N-splits
    sum_ce, sum_sl1, sum_ad, sum_obj, sum_corr = (sums[:, i] for i in range(5))
    hg = has_graspness.astype(jnp.float32).reshape(B)
    inv_n = 1.0 / N
    denom = sum_obj + 1e-6
    loss_objectness = sum_ce * inv_n
    loss_graspness = sum_sl1 / denom * hg
    acc_objectness = sum_corr * inv_n
    abs_graspness = sum_ad / denom
    loss = W_OBJECTNESS * loss_objectness + W_GRASPNESS * loss_graspness
    result_dict = dict(loss_objectness=loss_objectness,
                       loss_graspness=loss_graspness,
                       acc_objectness=acc_objectness,
                       abs_graspness=abs_graspness,
                       loss=loss)
    return loss.mean(), result_dict


def reference_forward(points, gt_objectness, gt_graspness, has_graspness, params):
    """Pure-JAX mirror of the PyTorch loss path.  Matmul inputs are cast to
    bf16 with f32 accumulation to mirror the kernel's MXU precision choice
    (the PyTorch module is f32 throughout; delta is ~1e-3 at the loss level).
    All elementwise math, sums and divides are f32, as in the kernel."""
    pts_bf = points.astype(jnp.bfloat16)
    wb_bf = params["wb"].astype(jnp.bfloat16)
    bb = params["bb"].astype(jnp.bfloat16).astype(jnp.float32)
    pre = jnp.einsum("bnd,dc->bnc", pts_bf, wb_bf,
                     preferred_element_type=jnp.float32) + bb
    feat = jnp.tanh(pre)
    g = jnp.einsum("bnc,cd->bnd", feat.astype(jnp.bfloat16),
                   params["wg"].astype(jnp.bfloat16),
                   preferred_element_type=jnp.float32) + params["bg"].astype(jnp.float32)
    logits, graspness = g[..., :2], g[..., 2]
    gt_obj = gt_objectness.astype(jnp.float32)
    gt_g = gt_graspness

    lse = jax.nn.logsumexp(logits, axis=-1)
    logit_t = jnp.where(gt_obj > 0.5, logits[..., 1], logits[..., 0])
    loss_obj = (lse - logit_t).mean(axis=1)

    d = graspness * gt_obj - gt_g * gt_obj
    ad = jnp.abs(d)
    sl1 = jnp.where(ad < 1.0, 0.5 * d * d, ad - 0.5)
    denom = gt_obj.sum(axis=1) + 1e-6
    loss_g = sl1.sum(axis=1) / denom * has_graspness.reshape(-1)

    acc = (jnp.argmax(logits, axis=-1).astype(jnp.float32)
           == gt_obj).astype(jnp.float32).mean(axis=-1)
    abs_g = ad.sum(axis=-1) / denom
    loss = W_OBJECTNESS * loss_obj + W_GRASPNESS * loss_g
    return loss_obj, loss_g, acc, abs_g, loss


if __name__ == "__main__":
    key = jax.random.PRNGKey(0)
    B, N, C = 2, 256, FEATURE_DIM
    k1, k2, k3, k4, k5, k6, k7 = jax.random.split(key, 7)

    points = jax.random.normal(k1, (B, N, 3), jnp.float32)
    gt_objectness = jax.random.bernoulli(k2, 0.5, (B, N)).astype(jnp.int32)
    gt_graspness = jax.random.normal(k3, (B, N), jnp.float32)
    has_graspness = jnp.ones((B, 1), jnp.float32)

    # deterministic synthetic parameters (module __init__ shapes)
    params = dict(
        wb=0.5 * jax.random.normal(k4, (3, C), jnp.float32),
        bb=0.1 * jax.random.normal(k5, (C,), jnp.float32),
        wg=0.1 * jax.random.normal(k6, (C, 3), jnp.float32),
        bg=0.1 * jax.random.normal(k7, (3,), jnp.float32),
    )

    loss, result = graspness_sample_forward(
        points, gt_objectness, gt_graspness, has_graspness, params)
    jax.block_until_ready((loss, result))

    # sanity check against pure-JAX reference
    ref = reference_forward(points, gt_objectness, gt_graspness,
                            has_graspness, params)
    got = (result["loss_objectness"], result["loss_graspness"],
           result["acc_objectness"], result["abs_graspness"], result["loss"])
    for g_arr, r_arr in zip(got, ref):
        assert jnp.allclose(g_arr, r_arr, rtol=1e-2, atol=1e-2), (g_arr, r_arr)

    print("KERNEL_OK")
</pallas_src>

<mosaic_0001>
module attributes {stable_mosaic.version = 11 : i64} {
  func.func @_graspness_kernel(%arg0: i32, %arg1: i32, %arg2: i32, %arg3: memref<1x8x256xbf16, #tpu.memory_space<vmem>>, %arg4: memref<1x2x256xf32, #tpu.memory_space<vmem>>, %arg5: memref<128x8xbf16, #tpu.memory_space<vmem>>, %arg6: memref<3x128xbf16, #tpu.memory_space<vmem>>, %arg7: memref<3x1xf32, #tpu.memory_space<vmem>>, %arg8: memref<1x1x8x1xf32, #tpu.memory_space<vmem>>, %arg9: memref<8x1xf32, #tpu.memory_space<vmem>>) attributes {dimension_semantics = [#tpu.dimension_semantics<parallel>, #tpu.dimension_semantics<parallel>, #tpu.dimension_semantics<arbitrary>], iteration_bounds = array<i64: 1, 2, 1>, scalar_prefetch = 0 : i64, scratch_operands = 1 : i64, tpu.core_type = #tpu.core_type<tc>, window_params = [{transform_indices = @transform_0, window_bounds = array<i64: 1, 8, 256>}, {transform_indices = @transform_1, window_bounds = array<i64: 1, 2, 256>}, {pipeline_mode = #tpu.pipeline_mode<synchronous>, transform_indices = @transform_2, window_bounds = array<i64: 128, 8>}, {pipeline_mode = #tpu.pipeline_mode<synchronous>, transform_indices = @transform_3, window_bounds = array<i64: 3, 128>}, {pipeline_mode = #tpu.pipeline_mode<synchronous>, transform_indices = @transform_4, window_bounds = array<i64: 3, 1>}, {transform_indices = @transform_5, window_bounds = array<i64: 1, 1, 8, 1>}]} {
    %c0_i32 = arith.constant 0 : i32
    %0 = arith.cmpi eq, %arg2, %c0_i32 : i32
    %1 = arith.extui %0 : i1 to i32
    %c0_i32_0 = arith.constant 0 : i32
    %2 = arith.cmpi ne, %1, %c0_i32_0 : i32
    scf.if %2 {
      %cst_30 = arith.constant 0.000000e+00 : f32
      %67 = vector.broadcast %cst_30 : f32 to vector<8x1xf32>
      %c0_31 = arith.constant 0 : index
      %c0_32 = arith.constant 0 : index
      %68 = vector.load %arg9[%c0_31, %c0_32] : memref<8x1xf32, #tpu.memory_space<vmem>>, vector<8x1xf32>
      tpu.vector_store %arg9[%c0_31, %c0_32], %67 {strides = array<i32>} : memref<8x1xf32, #tpu.memory_space<vmem>>, vector<8x1xf32>,
    } else {
    }
    %c0 = arith.constant 0 : index
    %c0_1 = arith.constant 0 : index
    %3 = vector.load %arg5[%c0, %c0_1] : memref<128x8xbf16, #tpu.memory_space<vmem>>, vector<128x8xbf16>
    %c0_2 = arith.constant 0 : index
    %c0_3 = arith.constant 0 : index
    %c0_4 = arith.constant 0 : index
    %4 = vector.load %arg3[%c0_2, %c0_3, %c0_4] : memref<1x8x256xbf16, #tpu.memory_space<vmem>>, vector<1x8x256xbf16>
    %5 = vector.shape_cast %4 : vector<1x8x256xbf16> to vector<8x256xbf16>
    %cst = arith.constant dense<0.000000e+00> : vector<128x256xf32>
    %6 = tpu.matmul %3, %5, %cst {dimension_numbers = #tpu.dot_dimension_numbers<[1], [0], [0], [1], [0, 0, 1, 1], [], []>} : vector<128x8xbf16>, vector<8x256xbf16>, vector<128x256xf32> -> vector<128x256xf32>
    %7 = math.tanh %6 : vector<128x256xf32>
    %c0_5 = arith.constant 0 : index
    %c0_6 = arith.constant 0 : index
    %8 = vector.load %arg6[%c0_5, %c0_6] : memref<3x128xbf16, #tpu.memory_space<vmem>>, vector<3x128xbf16>
    %9 = arith.truncf %7 : vector<128x256xf32> to vector<128x256xbf16>
    %cst_7 = arith.constant dense<0.000000e+00> : vector<3x256xf32>
    %10 = tpu.matmul %8, %9, %cst_7 {dimension_numbers = #tpu.dot_dimension_numbers<[1], [0], [0], [1], [0, 0, 1, 1], [], []>} : vector<3x128xbf16>, vector<128x256xbf16>, vector<3x256xf32> -> vector<3x256xf32>
    %c0_8 = arith.constant 0 : index
    %c0_9 = arith.constant 0 : index
    %11 = vector.load %arg7[%c0_8, %c0_9] : memref<3x1xf32, #tpu.memory_space<vmem>>, vector<3x1xf32>
    %12 = vector.broadcast %11 : vector<3x1xf32> to vector<3x256xf32>
    %13 = arith.addf %10, %12 : vector<3x256xf32>
    %14 = vector.extract_strided_slice %13 {offsets = [0, 0], sizes = [1, 256], strides = [1, 1]} : vector<3x256xf32> to vector<1x256xf32>
    %15 = vector.extract_strided_slice %13 {offsets = [1, 0], sizes = [1, 256], strides = [1, 1]} : vector<3x256xf32> to vector<1x256xf32>
    %16 = vector.extract_strided_slice %13 {offsets = [2, 0], sizes = [1, 256], strides = [1, 1]} : vector<3x256xf32> to vector<1x256xf32>
    %c0_10 = arith.constant 0 : index
    %c0_11 = arith.constant 0 : index
    %c0_12 = arith.constant 0 : index
    %17 = vector.load %arg4[%c0_10, %c0_11, %c0_12] : memref<1x2x256xf32, #tpu.memory_space<vmem>>, vector<1x1x256xf32>
    %18 = vector.shape_cast %17 : vector<1x1x256xf32> to vector<1x256xf32>
    %c0_13 = arith.constant 0 : index
    %c1 = arith.constant 1 : index
    %c0_14 = arith.constant 0 : index
    %19 = vector.load %arg4[%c0_13, %c1, %c0_14] : memref<1x2x256xf32, #tpu.memory_space<vmem>>, vector<1x1x256xf32>
    %20 = vector.shape_cast %19 : vector<1x1x256xf32> to vector<1x256xf32>
    %21 = arith.maximumf %14, %15 : vector<1x256xf32>
    %22 = arith.subf %14, %21 : vector<1x256xf32>
    %23 = math.exp %22 : vector<1x256xf32>
    %24 = arith.subf %15, %21 : vector<1x256xf32>
    %25 = math.exp %24 : vector<1x256xf32>
    %26 = arith.addf %23, %25 : vector<1x256xf32>
    %27 = math.log %26 : vector<1x256xf32>
    %28 = arith.addf %21, %27 : vector<1x256xf32>
    %cst_15 = arith.constant 5.000000e-01 : f32
    %29 = vector.broadcast %cst_15 : f32 to vector<1x256xf32>
    %30 = arith.cmpf ogt, %18, %29 : vector<1x256xf32>
    %31 = arith.select %30, %15, %14 : vector<1x256xi1>, vector<1x256xf32>
    %32 = arith.subf %28, %31 : vector<1x256xf32>
    %33 = arith.subf %16, %20 : vector<1x256xf32>
    %34 = arith.mulf %33, %18 : vector<1x256xf32>
    %35 = math.absf %34 : vector<1x256xf32>
    %cst_16 = arith.constant 1.000000e+00 : f32
    %36 = vector.broadcast %cst_16 : f32 to vector<1x256xf32>
    %37 = arith.cmpf olt, %35, %36 : vector<1x256xf32>
    %cst_17 = arith.constant 5.000000e-01 : f32
    %38 = vector.broadcast %cst_17 : f32 to vector<1x256xf32>
    %39 = arith.mulf %38, %34 : vector<1x256xf32>
    %40 = arith.mulf %39, %34 : vector<1x256xf32>
    %cst_18 = arith.constant 5.000000e-01 : f32
    %41 = vector.broadcast %cst_18 : f32 to vector<1x256xf32>
    %42 = arith.subf %35, %41 : vector<1x256xf32>
    %43 = arith.select %37, %40, %42 : vector<1x256xi1>, vector<1x256xf32>
    %44 = arith.cmpf ogt, %15, %14 : vector<1x256xf32>
    %45 = arith.extui %44 : vector<1x256xi1> to vector<1x256xi32>
    %46 = arith.sitofp %45 : vector<1x256xi32> to vector<1x256xf32>
    %47 = arith.cmpf oeq, %46, %18 : vector<1x256xf32>
    %48 = arith.extui %47 : vector<1x256xi1> to vector<1x256xi32>
    %49 = arith.sitofp %48 : vector<1x256xi32> to vector<1x256xf32>
    %cst_19 = arith.constant dense<0.000000e+00> : vector<1xf32>
    %50 = vector.multi_reduction <add>, %32, %cst_19 [1] : vector<1x256xf32> to vector<1xf32>
    %51 = vector.shape_cast %50 : vector<1xf32> to vector<1x1xf32>
    %cst_20 = arith.constant dense<0.000000e+00> : vector<1xf32>
    %52 = vector.multi_reduction <add>, %43, %cst_20 [1] : vector<1x256xf32> to vector<1xf32>
    %53 = vector.shape_cast %52 : vector<1xf32> to vector<1x1xf32>
    %cst_21 = arith.constant dense<0.000000e+00> : vector<1xf32>
    %54 = vector.multi_reduction <add>, %35, %cst_21 [1] : vector<1x256xf32> to vector<1xf32>
    %55 = vector.shape_cast %54 : vector<1xf32> to vector<1x1xf32>
    %cst_22 = arith.constant dense<0.000000e+00> : vector<1xf32>
    %56 = vector.multi_reduction <add>, %18, %cst_22 [1] : vector<1x256xf32> to vector<1xf32>
    %57 = vector.shape_cast %56 : vector<1xf32> to vector<1x1xf32>
    %cst_23 = arith.constant dense<0.000000e+00> : vector<1xf32>
    %58 = vector.multi_reduction <add>, %49, %cst_23 [1] : vector<1x256xf32> to vector<1xf32>
    %59 = vector.shape_cast %58 : vector<1xf32> to vector<1x1xf32>
    %60 = tpu.concatenate %51, %53, %55, %57, %59 in 0 : vector<1x1xf32>, vector<1x1xf32>, vector<1x1xf32>, vector<1x1xf32>, vector<1x1xf32> -> vector<5x1xf32>
    %c0_24 = arith.constant 0 : index
    %c0_25 = arith.constant 0 : index
    %61 = vector.load %arg9[%c0_24, %c0_25] : memref<8x1xf32, #tpu.memory_space<vmem>>, vector<5x1xf32>
    %62 = arith.addf %61, %60 : vector<5x1xf32>
    %c0_26 = arith.constant 0 : index
    %c0_27 = arith.constant 0 : index
    %63 = vector.load %arg9[%c0_26, %c0_27] : memref<8x1xf32, #tpu.memory_space<vmem>>, vector<5x1xf32>
    tpu.vector_store %arg9[%c0_26, %c0_27], %62 {strides = array<i32>} : memref<8x1xf32, #tpu.memory_space<vmem>>, vector<5x1xf32>,
    %c0_i32_28 = arith.constant 0 : i32
    %64 = arith.cmpi eq, %arg2, %c0_i32_28 : i32
    %65 = arith.extui %64 : i1 to i32
    %c0_i32_29 = arith.constant 0 : i32
    %66 = arith.cmpi ne, %65, %c0_i32_29 : i32
    scf.if %66 {
      %c0_30 = arith.constant 0 : index
      %c0_31 = arith.constant 0 : index
      %67 = vector.load %arg9[%c0_30, %c0_31] : memref<8x1xf32, #tpu.memory_space<vmem>>, vector<8x1xf32>
      %c0_32 = arith.constant 0 : index
      %c0_33 = arith.constant 0 : index
      %c0_34 = arith.constant 0 : index
      %c0_35 = arith.constant 0 : index
      %68 = vector.load %arg8[%c0_32, %c0_33, %c0_34, %c0_35] : memref<1x1x8x1xf32, #tpu.memory_space<vmem>>, vector<1x1x8x1xf32>
      %69 = vector.shape_cast %68 : vector<1x1x8x1xf32> to vector<8x1xf32>
      %70 = vector.shape_cast %67 : vector<8x1xf32> to vector<1x1x8x1xf32>
      tpu.vector_store %arg8[%c0_32, %c0_33, %c0_34, %c0_35], %70 {strides = array<i32>} : memref<1x1x8x1xf32, #tpu.memory_space<vmem>>, vector<1x1x8x1xf32>,
    } else {
    }
    return
  }
  func.func @transform_0(%arg0: i32, %arg1: i32, %arg2: i32) -> (i32, i32, i32) {
    %c1_i32 = arith.constant 1 : i32
    %0 = arith.muli %arg0, %c1_i32 : i32
    %1 = arith.addi %0, %arg2 : i32
    %c0_i32 = arith.constant 0 : i32
    %c0_i32_0 = arith.constant 0 : i32
    return %arg1, %c0_i32, %1 : i32, i32, i32
  }
  func.func @transform_1(%arg0: i32, %arg1: i32, %arg2: i32) -> (i32, i32, i32) {
    %c1_i32 = arith.constant 1 : i32
    %0 = arith.muli %arg0, %c1_i32 : i32
    %1 = arith.addi %0, %arg2 : i32
    %c0_i32 = arith.constant 0 : i32
    %c0_i32_0 = arith.constant 0 : i32
    return %arg1, %c0_i32, %1 : i32, i32, i32
  }
  func.func @transform_2(%arg0: i32, %arg1: i32, %arg2: i32) -> (i32, i32) {
    %c0_i32 = arith.constant 0 : i32
    %c0_i32_0 = arith.constant 0 : i32
    %c0_i32_1 = arith.constant 0 : i32
    return %c0_i32, %c0_i32_0 : i32, i32
  }
  func.func @transform_3(%arg0: i32, %arg1: i32, %arg2: i32) -> (i32, i32) {
    %c0_i32 = arith.constant 0 : i32
    %c0_i32_0 = arith.constant 0 : i32
    %c0_i32_1 = arith.constant 0 : i32
    return %c0_i32, %c0_i32_0 : i32, i32
  }
  func.func @transform_4(%arg0: i32, %arg1: i32, %arg2: i32) -> (i32, i32) {
    %c0_i32 = arith.constant 0 : i32
    %c0_i32_0 = arith.constant 0 : i32
    %c0_i32_1 = arith.constant 0 : i32
    return %c0_i32, %c0_i32_0 : i32, i32
  }
  func.func @transform_5(%arg0: i32, %arg1: i32, %arg2: i32) -> (i32, i32, i32, i32) {
    %c0_i32 = arith.constant 0 : i32
    %c0_i32_0 = arith.constant 0 : i32
    %c0_i32_1 = arith.constant 0 : i32
    return %arg0, %arg1, %c0_i32, %c0_i32_0 : i32, i32, i32, i32
  }
}

</mosaic_0001>

<llo_original>
// kernel: tpu_custom_call.1
$region0: #{tpu_custom_call.1}
  #allocation0 [shape = 'u32[]', space=smem, size = 0x4, offset = 0x4, fixed_abs, tag = 'smem constant byte address 0x4 - core index']
  #allocation1 [shape = 'u32[144,128]{1,0:T(1,128)}', space=vmem, size = 0x12000, scoped, tag = 'internal scratch']
  #allocation2 [shape = 'f32[8,1]{1,0:T(8,128)}', space=vmem, size = 0x1000, scoped, tag = 'scratch operand']
  %s0 = inlined_call_operand.vmem [shape: bf16[2,8,256], index: 0, kind: input, shape index: {}]
  %s1 = inlined_call_operand.vmem [shape: f32[2,2,256], index: 1, kind: input, shape index: {}]
  %s2 = inlined_call_operand.vmem [shape: bf16[128,8], index: 2, kind: input, shape index: {}]
  %s3 = inlined_call_operand.vmem [shape: bf16[3,128], index: 3, kind: input, shape index: {}]
  %s4 = inlined_call_operand.vmem [shape: f32[3,1], index: 4, kind: input, shape index: {}]
  %s5 = inlined_call_operand.vmem [shape: f32[1,2,8,1], index: 5, kind: output, shape index: {}]
  %s6 = sld [smem:[#allocation0]]
  $region61: #{tpu_custom_call.1} parent=0
    _
  %s8 = ssub.s32 1, %s6
  %s9 = scalar_select 0, %s8, %s6
  loop: start=0, step=1, limit=4
  $region2: #{tpu_custom_call.1} parent=0 // loop_pre_header
    _
  $region3: #{tpu_custom_call.1} parent=0 // loop_header
    %s11 = sphi 0, %s15
    %p12 = scmp.ge.s32.totalorder %s11, 4
    %s18 = sphi 0, %s37
    %s19 = sphi 0, %s33
    %s20 = sphi 0, %s29
    %s21 = sphi 0, %s18
    %s22 = sphi 0, %s19
    %s23 = sphi 0, %s20
    %s24 = sphi 0, %s21
    %s25 = sphi 0, %s22
    %s26 = sphi 0, %s23
    %s44 = sphi 0, %s46
    %s47 = sphi 0, %s44
    %s48 = sphi 0, %s47
    %s64 = sphi 0, %s48
    %s74 = sphi 0, %s76
    %s77 = sphi 0, %s74
    %s78 = sphi 0, %s77
    %s94 = sphi 0, %s78
    %s98 = sphi 0, %s98
    %s100 = sphi 0, %s98
    %s101 = sphi 0, %s100
    %s115 = sphi 0, %s101
    %s119 = sphi 0, %s119
    %s121 = sphi 0, %s119
    %s122 = sphi 0, %s121
    %s136 = sphi 0, %s122
    %s140 = sphi 0, %s140
    %s142 = sphi 0, %s140
    %s143 = sphi 0, %s142
    %s157 = sphi 0, %s143
    %s165 = sphi 0, %s167
    %s168 = sphi 0, %s165
    %s169 = sphi 0, %s168
    %s185 = sphi 0, %s169
  $region4: #{tpu_custom_call.1} parent=0 // loop_header_branch
    %14 = sbr.rel (%p12) target = $region8
  $region5: #{tpu_custom_call.1} parent=0 // loop_body
    %s16 = ssub.s32 %s11, 1
    %s17 = ssub.s32 %s11, 2
    %s27 = sadd.s32 1, %s20
    %p28 = scmp.ge.s32.totalorder %s27, 1
    %s29 = scalar_select %p28, 0, %s27
    %s30 = sadd.s32 1, %s19
    %s31 = scalar_select %p28, %s30, %s19
    %p32 = scmp.ge.s32.totalorder %s31, 2
    %s33 = scalar_select %p32, 0, %s31
    %s34 = sadd.s32 1, %s18
    %s35 = scalar_select %p32, %s34, %s18
    %p36 = scmp.ge.s32.totalorder %s35, 1
    %s37 = scalar_select %p36, 0, %s35
    %s38 = sadd.s32 %s18, %s20
    %s39 = sadd.s32 %s37, %s29
    %s40 = ssub.s32 %s19, %s33
    %s41 = ssub.s32 %s38, %s39
    %s42 = sor.u32 %s40, %s41
    %p43 = scmp.eq.s32.totalorder %s42, 0
    %s45 = sadd.s32 %s44, 1
    %s46 = scalar_select %p43, %s44, %s45
    %p49 = pneg %p43
    %p50 = scmp.eq.s32.totalorder %s11, 1
    %p51 = por %p49, %p50
    %p52 = scmp.ne.s32.totalorder %s44, %s47
    %p53 = scmp.eq.s32.totalorder %s11, 0
    %p54 = por %p52, %p53
    %p55 = scmp.ne.s32.totalorder %s44, %s47
    %p56 = scmp.eq.s32.totalorder %s16, 1
    %p57 = por %p55, %p56
    %p58 = scmp.ne.s32.totalorder %s47, %s48
    %p59 = scmp.eq.s32.totalorder %s16, 0
    %p60 = por %p58, %p59
    %p61 = scmp.ne.s32.totalorder %s47, %s48
    %p62 = scmp.eq.s32.totalorder %s17, 1
    %p63 = por %p61, %p62
    %p65 = scmp.ne.s32.totalorder %s48, %s64
    %p66 = scmp.eq.s32.totalorder %s17, 0
    %p67 = por %p65, %p66
    %s68 = sadd.s32 %s18, %s20
    %s69 = sadd.s32 %s37, %s29
    %s70 = ssub.s32 %s19, %s33
    %s71 = ssub.s32 %s68, %s69
    %s72 = sor.u32 %s70, %s71
    %p73 = scmp.eq.s32.totalorder %s72, 0
    %s75 = sadd.s32 %s74, 1
    %s76 = scalar_select %p73, %s74, %s75
    %p79 = pneg %p73
    %p80 = scmp.eq.s32.totalorder %s11, 1
    %p81 = por %p79, %p80
    %p82 = scmp.ne.s32.totalorder %s74, %s77
    %p83 = scmp.eq.s32.totalorder %s11, 0
    %p84 = por %p82, %p83
    %p85 = scmp.ne.s32.totalorder %s74, %s77
    %p86 = scmp.eq.s32.totalorder %s16, 1
    %p87 = por %p85, %p86
    %p88 = scmp.ne.s32.totalorder %s77, %s78
    %p89 = scmp.eq.s32.totalorder %s16, 0
    %p90 = por %p88, %p89
    %p91 = scmp.ne.s32.totalorder %s77, %s78
    %p92 = scmp.eq.s32.totalorder %s17, 1
    %p93 = por %p91, %p92
    %p95 = scmp.ne.s32.totalorder %s78, %s94
    %p96 = scmp.eq.s32.totalorder %s17, 0
    %p97 = por %p95, %p96
    %s99 = sadd.s32 %s98, 1
    %p102 = scmp.eq.s32.totalorder %s11, 1
    %p103 = scmp.ne.s32.totalorder %s98, %s100
    %p104 = scmp.eq.s32.totalorder %s11, 0
    %p105 = por %p103, %p104
    %p106 = scmp.ne.s32.totalorder %s98, %s100
    %p107 = scmp.eq.s32.totalorder %s16, 1
    %p108 = por %p106, %p107
    %p109 = scmp.ne.s32.totalorder %s100, %s101
    %p110 = scmp.eq.s32.totalorder %s16, 0
    %p111 = por %p109, %p110
    %p112 = scmp.ne.s32.totalorder %s100, %s101
    %p113 = scmp.eq.s32.totalorder %s17, 1
    %p114 = por %p112, %p113
    %p116 = scmp.ne.s32.totalorder %s101, %s115
    %p117 = scmp.eq.s32.totalorder %s17, 0
    %p118 = por %p116, %p117
    %s120 = sadd.s32 %s119, 1
    %p123 = scmp.eq.s32.totalorder %s11, 1
    %p124 = scmp.ne.s32.totalorder %s119, %s121
    %p125 = scmp.eq.s32.totalorder %s11, 0
    %p126 = por %p124, %p125
    %p127 = scmp.ne.s32.totalorder %s119, %s121
    %p128 = scmp.eq.s32.totalorder %s16, 1
    %p129 = por %p127, %p128
    %p130 = scmp.ne.s32.totalorder %s121, %s122
    %p131 = scmp.eq.s32.totalorder %s16, 0
    %p132 = por %p130, %p131
    %p133 = scmp.ne.s32.totalorder %s121, %s122
    %p134 = scmp.eq.s32.totalorder %s17, 1
    %p135 = por %p133, %p134
    %p137 = scmp.ne.s32.totalorder %s122, %s136
    %p138 = scmp.eq.s32.totalorder %s17, 0
    %p139 = por %p137, %p138
    %s141 = sadd.s32 %s140, 1
    %p144 = scmp.eq.s32.totalorder %s11, 1
    %p145 = scmp.ne.s32.totalorder %s140, %s142
    %p146 = scmp.eq.s32.totalorder %s11, 0
    %p147 = por %p145, %p146
    %p148 = scmp.ne.s32.totalorder %s140, %s142
    %p149 = scmp.eq.s32.totalorder %s16, 1
    %p150 = por %p148, %p149
    %p151 = scmp.ne.s32.totalorder %s142, %s143
    %p152 = scmp.eq.s32.totalorder %s16, 0
    %p153 = por %p151, %p152
    %p154 = scmp.ne.s32.totalorder %s142, %s143
    %p155 = scmp.eq.s32.totalorder %s17, 1
    %p156 = por %p154, %p155
    %p158 = scmp.ne.s32.totalorder %s143, %s157
    %p159 = scmp.eq.s32.totalorder %s17, 0
    %p160 = por %p158, %p159
    %s161 = ssub.s32 %s18, %s37
    %s162 = ssub.s32 %s19, %s33
    %s163 = sor.u32 %s161, %s162
    %p164 = scmp.eq.s32.totalorder %s163, 0
    %s166 = sadd.s32 %s165, 1
    %s167 = scalar_select %p164, %s165, %s166
    %p170 = pneg %p164
    %p171 = scmp.eq.s32.totalorder %s11, 1
    %p172 = por %p170, %p171
    %p173 = scmp.ne.s32.totalorder %s165, %s168
    %p174 = scmp.eq.s32.totalorder %s11, 0
    %p175 = por %p173, %p174
    %p176 = scmp.ne.s32.totalorder %s165, %s168
    %p177 = scmp.eq.s32.totalorder %s16, 1
    %p178 = por %p176, %p177
    %p179 = scmp.ne.s32.totalorder %s168, %s169
    %p180 = scmp.eq.s32.totalorder %s16, 0
    %p181 = por %p179, %p180
    %p182 = scmp.ne.s32.totalorder %s168, %s169
    %p183 = scmp.eq.s32.totalorder %s17, 1
    %p184 = por %p182, %p183
    %p186 = scmp.ne.s32.totalorder %s169, %s185
    %p187 = scmp.eq.s32.totalorder %s17, 0
    %p188 = por %p186, %p187
    %p189 = scmp.le.s32.totalorder 1, %s11
    %p190 = scmp.lt.s32.totalorder %s11, 3
    %p191 = pnand %p189, %p190
    %p192 = pneg %p191
    // Predicated region
    $region9: #{tpu_custom_call.1} parent=5 // pred_check
      _
    $region10: #{tpu_custom_call.1} parent=5 // pred_check_branch
      %194 = sbr.rel (%p191) target = $region12
    $region11: #{tpu_custom_call.1} parent=5 // pred_region
      %s195 = ssub.s32 %s11, 1
      // Predicated region
      $region13: #{tpu_custom_call.1} parent=11 // pred_check
        %p196 = pneg %p111
      $region14: #{tpu_custom_call.1} parent=11 // pred_check_branch
        %198 = sbr.rel (%p196) target = $region16
      $region15: #{tpu_custom_call.1} parent=11 // pred_region
        _
      $region16: #{tpu_custom_call.1} parent=11 // pred_fallthru
        _
      // Predicated region
      $region17: #{tpu_custom_call.1} parent=11 // pred_check
        %p199 = pneg %p132
      $region18: #{tpu_custom_call.1} parent=11 // pred_check_branch
        %201 = sbr.rel (%p199) target = $region20
      $region19: #{tpu_custom_call.1} parent=11 // pred_region
        _
      $region20: #{tpu_custom_call.1} parent=11 // pred_fallthru
        _
      // Predicated region
      $region21: #{tpu_custom_call.1} parent=11 // pred_check
        %p202 = pneg %p153
      $region22: #{tpu_custom_call.1} parent=11 // pred_check_branch
        %204 = sbr.rel (%p202) target = $region24
      $region23: #{tpu_custom_call.1} parent=11 // pred_region
        _
      $region24: #{tpu_custom_call.1} parent=11 // pred_fallthru
        _
    $region12: #{tpu_custom_call.1} parent=5 // pred_fallthru
      _
    %p205 = scmp.lt.s32.totalorder %s11, 2
    // Predicated region
    $region25: #{tpu_custom_call.1} parent=5 // pred_check
      %p206 = pneg %p205
    $region26: #{tpu_custom_call.1} parent=5 // pred_check_branch
      %208 = sbr.rel (%p206) target = $region28
    $region27: #{tpu_custom_call.1} parent=5 // pred_region
      // Predicated region
      $region29: #{tpu_custom_call.1} parent=27 // pred_check
        %p209 = pneg %p54
      $region30: #{tpu_custom_call.1} parent=27 // pred_check_branch
        %211 = sbr.rel (%p209) target = $region32
      $region31: #{tpu_custom_call.1} parent=27 // pred_region
        %s212 = sadd.s32 %s18, %s20
        %s213 = smul.u32 2, %s212
        %p214 = scmp.lt.s32.totalorder %s19, 1
        %s215 = scalar_select %p214, %s19, 1
        %p216 = scmp.lt.s32.totalorder %s213, 1
        %s217 = scalar_select %p216, %s213, 1
        %s218 = smul.addr %s215, 2
        %s219 = sadd.s32 %s217, %s218
        %s220 = smul.addr %s219, 4
        %s221 = scalar_lea.vmem %s0, %s220
        %s222 = sadd.s32 %s18, %s20
        %s223 = smul.u32 2, %s222
      $region32: #{tpu_custom_call.1} parent=27 // pred_fallthru
        _
      // Predicated region
      $region33: #{tpu_custom_call.1} parent=27 // pred_check
        %p224 = pneg %p84
      $region34: #{tpu_custom_call.1} parent=27 // pred_check_branch
        %226 = sbr.rel (%p224) target = $region36
      $region35: #{tpu_custom_call.1} parent=27 // pred_region
        %s227 = sadd.s32 %s18, %s20
        %s228 = smul.u32 2, %s227
        %p229 = scmp.lt.s32.totalorder %s19, 1
        %s230 = scalar_select %p229, %s19, 1
        %p231 = scmp.lt.s32.totalorder %s228, 1
        %s232 = scalar_select %p231, %s228, 1
        %s233 = smul.addr %s230, 2
        %s234 = sadd.s32 %s232, %s233
        %s235 = smul.addr %s234, 2
        %s236 = scalar_lea.vmem %s1, %s235
        %s237 = sadd.s32 %s18, %s20
        %s238 = smul.u32 2, %s237
      $region36: #{tpu_custom_call.1} parent=27 // pred_fallthru
        _
    $region28: #{tpu_custom_call.1} parent=5 // pred_fallthru
      _
    %p239 = scmp.le.s32.totalorder 1, %s11
    %p240 = scmp.lt.s32.totalorder %s11, 3
    %p241 = pnand %p239, %p240
    %p242 = pneg %p241
    // Predicated region
    $region37: #{tpu_custom_call.1} parent=5 // pred_check
      _
    $region38: #{tpu_custom_call.1} parent=5 // pred_check_branch
      %244 = sbr.rel (%p241) target = $region40
    $region39: #{tpu_custom_call.1} parent=5 // pred_region
      %s245 = ssub.s32 %s11, 1
      %s246 = sadd.s32 %s21, %s23
      %s247 = smul.u32 2, %s246
      %p248 = scmp.lt.s32.totalorder %s22, 1
      %s249 = scalar_select %p248, %s22, 1
      %p250 = scmp.lt.s32.totalorder %s247, 1
      %s251 = scalar_select %p250, %s247, 1
      %s252 = smul.addr %s249, 2
      %s253 = sadd.s32 %s251, %s252
      %s254 = smul.addr %s253, 4
      %s255 = scalar_lea.vmem %s0, %s254
      %p256 = pneg %p60
      %p257 = pneg %p57
      %s258 = sadd.s32 %s21, %s23
      %s259 = smul.u32 2, %s258
      %p260 = scmp.lt.s32.totalorder %s22, 1
      %s261 = scalar_select %p260, %s22, 1
      %p262 = scmp.lt.s32.totalorder %s259, 1
      %s263 = scalar_select %p262, %s259, 1
      %s264 = smul.addr %s261, 2
      %s265 = sadd.s32 %s263, %s264
      %s266 = smul.addr %s265, 2
      %s267 = scalar_lea.vmem %s1, %s266
      %p268 = pneg %p90
      %p269 = pneg %p87
      %p270 = pneg %p111
      %p271 = pneg %p108
      %p272 = pneg %p132
      %p273 = pneg %p129
      %p274 = pneg %p153
      %p275 = pneg %p150
      %p276 = pneg %p181
      %p277 = pneg %p178
      %p278 = scmp.lt.s32.totalorder %s21, 0
      %s279 = scalar_select %p278, %s21, 0
      %p280 = scmp.lt.s32.totalorder %s22, 1
      %s281 = scalar_select %p280, %s22, 1
      %s282 = smul.addr %s279, 2
      %s283 = sadd.s32 %s281, %s282
      %s284 = smul.addr %s283, 8
      %s285 = scalar_lea.vmem %s5, %s284
      %s286 = sadd.s32 %s21, %s23
      %s287 = smul.u32 2, %s286
      %p288 = scmp.lt.s32.totalorder %s22, 1
      %s289 = scalar_select %p288, %s22, 1
      %p290 = scmp.lt.s32.totalorder %s287, 1
      %s291 = scalar_select %p290, %s287, 1
      %s292 = smul.addr %s289, 2
      %s293 = sadd.s32 %s291, %s292
      %s294 = smul.addr %s293, 4
      %s295 = scalar_lea.vmem %s0, %s294
      %s296 = sadd.s32 %s21, %s23
      %s297 = smul.u32 2, %s296
      %s298 = sadd.s32 %s21, %s23
      %s299 = smul.u32 2, %s298
      %p300 = scmp.lt.s32.totalorder %s22, 1
      %s301 = scalar_select %p300, %s22, 1
      %p302 = scmp.lt.s32.totalorder %s299, 1
      %s303 = scalar_select %p302, %s299, 1
      %s304 = smul.addr %s301, 2
      %s305 = sadd.s32 %s303, %s304
      %s306 = smul.addr %s305, 2
      %s307 = scalar_lea.vmem %s1, %s306
      %s308 = sadd.s32 %s21, %s23
      %s309 = smul.u32 2, %s308
      %p310 = scmp.lt.s32.totalorder %s21, 0
      %s311 = scalar_select %p310, %s21, 0
      %p312 = scmp.lt.s32.totalorder %s22, 1
      %s313 = scalar_select %p312, %s22, 1
      %s314 = smul.addr %s311, 2
      %s315 = sadd.s32 %s313, %s314
      %s316 = smul.addr %s315, 8
      %s317 = scalar_lea.vmem %s5, %s316
      %p319 = scmp.eq.s32.totalorder %s23, 0
      // Predicated region
      $region41: #{tpu_custom_call.1} parent=39 // pred_check
        %p320 = pneg %p319
      $region42: #{tpu_custom_call.1} parent=39 // pred_check_branch
        %322 = sbr.rel (%p320) target = $region44
      $region43: #{tpu_custom_call.1} parent=39 // pred_region
        %vm323 = vcmask 7168
        %324 = vst.msk [vmem:[#allocation2] sm:$0xff] %vm323, 0.0
      $region44: #{tpu_custom_call.1} parent=39 // pred_fallthru
        _
      %v325 = vld [vmem:[%s2] sm:$0xf]
      %v326 = vld [vmem:[%s2 + $0x4] sm:$0xf]
      %v327 = vld [vmem:[%s2 + $0x8] sm:$0xf]
      %v328 = vld [vmem:[%s2 + $0xc] sm:$0xf]
      %v329 = vld [vmem:[%s2 + $0x10] sm:$0xf]
      %v330 = vld [vmem:[%s2 + $0x14] sm:$0xf]
      %v331 = vld [vmem:[%s2 + $0x18] sm:$0xf]
      %v332 = vld [vmem:[%s2 + $0x1c] sm:$0xf]
      %v333 = vld [vmem:[%s2 + $0x20] sm:$0xf]
      %v334 = vld [vmem:[%s2 + $0x24] sm:$0xf]
      %v335 = vld [vmem:[%s2 + $0x28] sm:$0xf]
      %v336 = vld [vmem:[%s2 + $0x2c] sm:$0xf]
      %v337 = vld [vmem:[%s2 + $0x30] sm:$0xf]
      %v338 = vld [vmem:[%s2 + $0x34] sm:$0xf]
      %v339 = vld [vmem:[%s2 + $0x38] sm:$0xf]
      %v340 = vld [vmem:[%s2 + $0x3c] sm:$0xf]
      %v341 = vld [vmem:[%s295] sm:$0xff]
      %v358 = vunpack.c.l.b16 %v325
      %v359 = vunpack.c.l.b16 %v326
      %v360 = vunpack.c.l.b16 %v327
      %v361 = vunpack.c.l.b16 %v328
      %v362 = vunpack.c.l.b16 %v329
      %v363 = vunpack.c.l.b16 %v330
      %v364 = vunpack.c.l.b16 %v331
      %v365 = vunpack.c.l.b16 %v332
      %v366 = vunpack.c.l.b16 %v333
      %v367 = vunpack.c.l.b16 %v334
      %v368 = vunpack.c.l.b16 %v335
      %v369 = vunpack.c.l.b16 %v336
      %v370 = vunpack.c.l.b16 %v337
      %v371 = vunpack.c.l.b16 %v338
      %v372 = vunpack.c.l.b16 %v339
      %v373 = vunpack.c.l.b16 %v340
      %v374 = vpack.c.b16 %v359, %v358
      %v375 = vpack.c.b16 %v361, %v360
      %v376 = vpack.c.b16 %v363, %v362
      %v377 = vpack.c.b16 %v365, %v364
      %v378 = vpack.c.b16 %v367, %v366
      %v379 = vpack.c.b16 %v369, %v368
      %v380 = vpack.c.b16 %v371, %v370
      %v381 = vpack.c.b16 %v373, %v372
      %v383 = vunpack.c.l.b16 %v341
      %v384 = vunpack.c.h.b16 %v341
      %v385 = vpack.c.b16 %v383, %v383
      %v386 = vpack.c.b16 %v384, %v384
      %vm387 = vcmask 64512
      %v389 = vsel %vm387, %v374, 0
      %v392 = vsel %vm387, %v375, 0
      %v395 = vsel %vm387, %v376, 0
      %v398 = vsel %vm387, %v377, 0
      %v401 = vsel %vm387, %v378, 0
      %v404 = vsel %vm387, %v379, 0
      %v407 = vsel %vm387, %v380, 0
      %v410 = vsel %vm387, %v381, 0
      %vm412 = vcmask 1043456
      %v414 = vsel %vm412, %v385, 0
      %v417 = vsel %vm412, %v386, 0
      %419 = vmatprep.subr.bf16.mxu0 %v417
      %420 = vmatpush1.bf16.msra.mxu0 %v414
      %421 = vmatprep.subr.bf16.mxu0 0
      %422 = vmatpush1.bf16.msra.mxu0 0
      %423 = vmatprep.subr.bf16.mxu0 0
      %424 = vmatpush1.bf16.msra.mxu0 0
      %425 = vmatprep.subr.bf16.mxu0 0
      %426 = vmatpush1.bf16.msra.mxu0 0
      %427 = vmatprep.subr.bf16.mxu0 0
      %428 = vmatpush1.bf16.msra.mxu0 0
      %429 = vmatprep.subr.bf16.mxu0 0
      %430 = vmatpush1.bf16.msra.mxu0 0
      %431 = vmatprep.subr.bf16.mxu0 0
      %432 = vmatpush1.bf16.msra.mxu0 0
      %433 = vmatprep.subr.bf16.mxu0 0
      %434 = vmatpush1.bf16.msra.mxu0 0
      %435 = vmatprep.subr.bf16.mxu0 0
      %436 = vmatpush1.bf16.msra.mxu0 0
      %437 = vmatprep.subr.bf16.mxu0 0
      %438 = vmatpush1.bf16.msra.mxu0 0
      %439 = vmatprep.subr.bf16.mxu0 0
      %440 = vmatpush1.bf16.msra.mxu0 0
      %441 = vmatprep.subr.bf16.mxu0 0
      %442 = vmatpush1.bf16.msra.mxu0 0
      %443 = vmatprep.subr.bf16.mxu0 0
      %444 = vmatpush1.bf16.msra.mxu0 0
      %445 = vmatprep.subr.bf16.mxu0 0
      %446 = vmatpush1.bf16.msra.mxu0 0
      %447 = vmatprep.subr.bf16.mxu0 0
      %448 = vmatpush1.bf16.msra.mxu0 0
      %449 = vmatprep.subr.bf16.mxu0 0
      %450 = vmatpush1.bf16.msra.mxu0 0
      %451 = vmatprep.mubr.bf16.mxu0 0
      %452 = vmatmul.mubr.bf16.gmra.mrb[0].mxu0 %v389
      %v453 = vpop.f32.mrb[0].mxu0
      %v454 = vadd.f32 0.0, %v453
      %v455 = vpop.f32.mrb[0].mxu0
      %v456 = vadd.f32 0.0, %v455
      %v457 = vpop.f32.mrb[0].mxu0
      %v458 = vadd.f32 0.0, %v457
      %v459 = vpop.f32.mrb[0].mxu0
      %v460 = vadd.f32 0.0, %v459
      %461 = vmatprep.mubr.bf16.mxu0 0
      %462 = vmatmul.mubr.bf16.gmra.mrb[0].mxu0 %v392
      %v463 = vpop.f32.mrb[0].mxu0
      %v464 = vadd.f32 0.0, %v463
      %v465 = vpop.f32.mrb[0].mxu0
      %v466 = vadd.f32 0.0, %v465
      %v467 = vpop.f32.mrb[0].mxu0
      %v468 = vadd.f32 0.0, %v467
      %v469 = vpop.f32.mrb[0].mxu0
      %v470 = vadd.f32 0.0, %v469
      %471 = vmatprep.mubr.bf16.mxu0 0
      %472 = vmatmul.mubr.bf16.gmra.mrb[0].mxu0 %v395
      %v473 = vpop.f32.mrb[0].mxu0
      %v474 = vadd.f32 0.0, %v473
      %v475 = vpop.f32.mrb[0].mxu0
      %v476 = vadd.f32 0.0, %v475
      %v477 = vpop.f32.mrb[0].mxu0
      %v478 = vadd.f32 0.0, %v477
      %v479 = vpop.f32.mrb[0].mxu0
      %v480 = vadd.f32 0.0, %v479
      %481 = vmatprep.mubr.bf16.mxu0 0
      %482 = vmatmul.mubr.bf16.gmra.mrb[0].mxu0 %v398
      %v483 = vpop.f32.mrb[0].mxu0
      %v484 = vadd.f32 0.0, %v483
      %v485 = vpop.f32.mrb[0].mxu0
      %v486 = vadd.f32 0.0, %v485
      %v487 = vpop.f32.mrb[0].mxu0
      %v488 = vadd.f32 0.0, %v487
      %v489 = vpop.f32.mrb[0].mxu0
      %v490 = vadd.f32 0.0, %v489
      %491 = vmatprep.mubr.bf16.mxu0 0
      %492 = vmatmul.mubr.bf16.gmra.mrb[0].mxu0 %v401
      %v493 = vpop.f32.mrb[0].mxu0
      %v494 = vadd.f32 0.0, %v493
      %v495 = vpop.f32.mrb[0].mxu0
      %v496 = vadd.f32 0.0, %v495
      %v497 = vpop.f32.mrb[0].mxu0
      %v498 = vadd.f32 0.0, %v497
      %v499 = vpop.f32.mrb[0].mxu0
      %v500 = vadd.f32 0.0, %v499
      %501 = vmatprep.mubr.bf16.mxu0 0
      %502 = vmatmul.mubr.bf16.gmra.mrb[0].mxu0 %v404
      %v503 = vpop.f32.mrb[0].mxu0
      %v504 = vadd.f32 0.0, %v503
      %v505 = vpop.f32.mrb[0].mxu0
      %v506 = vadd.f32 0.0, %v505
      %v507 = vpop.f32.mrb[0].mxu0
      %v508 = vadd.f32 0.0, %v507
      %v509 = vpop.f32.mrb[0].mxu0
      %v510 = vadd.f32 0.0, %v509
      %511 = vmatprep.mubr.bf16.mxu0 0
      %512 = vmatmul.mubr.bf16.gmra.mrb[0].mxu0 %v407
      %v513 = vpop.f32.mrb[0].mxu0
      %v514 = vadd.f32 0.0, %v513
      %v515 = vpop.f32.mrb[0].mxu0
      %v516 = vadd.f32 0.0, %v515
      %v517 = vpop.f32.mrb[0].mxu0
      %v518 = vadd.f32 0.0, %v517
      %v519 = vpop.f32.mrb[0].mxu0
      %v520 = vadd.f32 0.0, %v519
      %521 = vmatprep.mubr.bf16.mxu0 0
      %522 = vmatmul.mubr.bf16.gmra.mrb[0].mxu0 %v410
      %v523 = vpop.f32.mrb[0].mxu0
      %v524 = vadd.f32 0.0, %v523
      %v525 = vpop.f32.mrb[0].mxu0
      %v526 = vadd.f32 0.0, %v525
      %v527 = vpop.f32.mrb[0].mxu0
      %v528 = vadd.f32 0.0, %v527
      %v529 = vpop.f32.mrb[0].mxu0
      %v530 = vadd.f32 0.0, %v529
      %531 = vdwg.mxu0
      %v532 = vtanh.pop %v454
      %v533 = vtanh.pop %v456
      %v534 = vtanh.pop %v458
      %v535 = vtanh.pop %v460
      %v536 = vtanh.pop %v464
      %v537 = vtanh.pop %v466
      %v538 = vtanh.pop %v468
      %v539 = vtanh.pop %v470
      %v540 = vtanh.pop %v474
      %v541 = vtanh.pop %v476
      %v542 = vtanh.pop %v478
      %v543 = vtanh.pop %v480
      %v544 = vtanh.pop %v484
      %v545 = vtanh.pop %v486
      %v546 = vtanh.pop %v488
      %v547 = vtanh.pop %v490
      %v548 = vtanh.pop %v494
      %v549 = vtanh.pop %v496
      %v550 = vtanh.pop %v498
      %v551 = vtanh.pop %v500
      %v552 = vtanh.pop %v504
      %v553 = vtanh.pop %v506
      %v554 = vtanh.pop %v508
      %v555 = vtanh.pop %v510
      %v556 = vtanh.pop %v514
      %v557 = vtanh.pop %v516
      %v558 = vtanh.pop %v518
      %v559 = vtanh.pop %v520
      %v560 = vtanh.pop %v524
      %v561 = vtanh.pop %v526
      %v562 = vtanh.pop %v528
      %v563 = vtanh.pop %v530
      %v564 = vld [vmem:[%s3] sm:$0x3]
      %v565 = vpack.c.bf16 %v534, %v532
      %v566 = vpack.c.bf16 %v535, %v533
      %v567 = vpack.c.bf16 %v538, %v536
      %v568 = vpack.c.bf16 %v539, %v537
      %v569 = vpack.c.bf16 %v542, %v540
      %v570 = vpack.c.bf16 %v543, %v541
      %v571 = vpack.c.bf16 %v546, %v544
      %v572 = vpack.c.bf16 %v547, %v545
      %v573 = vpack.c.bf16 %v550, %v548
      %v574 = vpack.c.bf16 %v551, %v549
      %v575 = vpack.c.bf16 %v554, %v552
      %v576 = vpack.c.bf16 %v555, %v553
      %v577 = vpack.c.bf16 %v558, %v556
      %v578 = vpack.c.bf16 %v559, %v557
      %v579 = vpack.c.bf16 %v562, %v560
      %v580 = vpack.c.bf16 %v563, %v561
      %v581 = vld [vmem:[%s4] sm:$0x7]
      %583 = vset.pattern.permute.xlu0 0
      %584 = vperm.xlu0 %583, %v581
      %v585 = vpop.permute.xlu0 %584
      %587 = vmatprep.subr.bf16.mxu0 %v566
      %588 = vmatpush1.bf16.msra.mxu0 %v565
      %589 = vmatprep.subr.bf16.mxu0 %v568
      %590 = vmatpush1.bf16.msra.mxu0 %v567
      %591 = vmatprep.subr.bf16.mxu0 %v570
      %592 = vmatpush1.bf16.msra.mxu0 %v569
      %593 = vmatprep.subr.bf16.mxu0 %v572
      %594 = vmatpush1.bf16.msra.mxu0 %v571
      %595 = vmatprep.subr.bf16.mxu0 %v574
      %596 = vmatpush1.bf16.msra.mxu0 %v573
      %597 = vmatprep.subr.bf16.mxu0 %v576
      %598 = vmatpush1.bf16.msra.mxu0 %v575
      %599 = vmatprep.subr.bf16.mxu0 %v578
      %600 = vmatpush1.bf16.msra.mxu0 %v577
      %601 = vmatprep.subr.bf16.mxu0 %v580
      %602 = vmatpush1.bf16.msra.mxu0 %v579
      %603 = vmatprep.subr.bf16.mxu0 0
      %604 = vmatpush1.bf16.msra.mxu0 0
      %605 = vmatprep.subr.bf16.mxu0 0
      %606 = vmatpush1.bf16.msra.mxu0 0
      %607 = vmatprep.subr.bf16.mxu0 0
      %608 = vmatpush1.bf16.msra.mxu0 0
      %609 = vmatprep.subr.bf16.mxu0 0
      %610 = vmatpush1.bf16.msra.mxu0 0
      %611 = vmatprep.subr.bf16.mxu0 0
      %612 = vmatpush1.bf16.msra.mxu0 0
      %613 = vmatprep.subr.bf16.mxu0 0
      %614 = vmatpush1.bf16.msra.mxu0 0
      %615 = vmatprep.subr.bf16.mxu0 0
      %616 = vmatpush1.bf16.msra.mxu0 0
      %617 = vmatprep.subr.bf16.mxu0 0
      %618 = vmatpush1.bf16.msra.mxu0 0
      %619 = vmatprep.mubr.bf16.mxu0 0
      %620 = vmatmul.mubr.bf16.gmra.mrb[0].mxu0 %v564
      %v621 = vpop.f32.mrb[0].mxu0
      %v622 = vadd.f32 %v585, %v621
      %v623 = vpop.f32.mrb[0].mxu0
      %v624 = vadd.f32 %v585, %v623
      %v625 = vpop.f32.mrb[0].mxu0
      %v626 = vpop.f32.mrb[0].mxu0
      %627 = vdwg.mxu0
      %v628 = vld [vmem:[%s307] ss:$2 sm:$0x3]
      %s629 = scalar_lea.vmem %s307, 1
      %v630 = vld [vmem:[%s629] ss:$2 sm:$0x3]
      %v633 = vrot.slane %v622, 1
      %v634 = vrot.slane %v624, 1
      %v637 = vmax.f32 %v622, %v633
      %v638 = vmax.f32 %v624, %v634
      %v639 = vsub.f32 %v622, %v637
      %v640 = vsub.f32 %v624, %v638
      %v641 = vmul.f32 %v639, 1.442695
      %v642 = vpow.pop %v641
      %v643 = vmul.f32 %v640, 1.442695
      %v644 = vpow.pop %v643
      %v647 = vrot.slane %v637, 7
      %v648 = vrot.slane %v638, 7
      %v651 = vsub.f32 %v622, %v647
      %v652 = vsub.f32 %v624, %v648
      %v653 = vmul.f32 %v651, 1.442695
      %v654 = vpow.pop %v653
      %v655 = vmul.f32 %v652, 1.442695
      %v656 = vpow.pop %v655
      %v659 = vrot.slane %v654, 1
      %v660 = vrot.slane %v656, 1
      %v663 = vadd.f32 %v642, %v659
      %v664 = vadd.f32 %v644, %v660
      %v665 = vlog2.pop %v663
      %v666 = vmul.f32 %v665, 0.6931472
      %v667 = vlog2.pop %v664
      %v668 = vmul.f32 %v667, 0.6931472
      %v669 = vadd.f32 %v637, %v666
      %v670 = vadd.f32 %v638, %v668
      %vm671 = vcmp.gt.f32.partialorder %v628, 0.5
      %v672 = vcombine.low %v622, %v624
      %v674 = vunpack.c.l.s4 1966171168
      %v675 = vunpack.c.0.s8 %v674
      %v676 = vlaneseq
      %v677 = vshrl.u32 %v676, 7
      %v678 = vsub.s32 %v675, %v677
      %v679 = vrot.slane %v672, %v678
      %v680 = vcombine.high %v679, %v679
      %v682 = vunpack.c.l.s4 1966171168
      %v683 = vunpack.c.0.s8 %v682
      %v684 = vlaneseq
      %v685 = vshrl.u32 %v684, 7
      %v686 = vsub.s32 %v683, %v685
      %v687 = vrot.slane %v680, %v686
      %v690 = vunpack.c.l.s4 1966171168
      %v691 = vunpack.c.0.s8 %v690
      %v692 = vlaneseq
      %v693 = vshrl.u32 %v692, 7
      %v694 = vsub.s32 %v691, %v693
      %v695 = vrot.slane %v679, %v694
      %v697 = vsel %vm671, %v687, %v695
      %v699 = vlaneseq
      %v700 = vshrl.u32 %v699, 7
      %v701 = vsub.s32 0, %v700
      %v702 = vrot.slane %v697, %v701
      %v703 = vlaneseq
      %v704 = vshrl.u32 %v703, 7
      %v705 = vsub.s32 1, %v704
      %v706 = vrot.slane %v697, %v705
      %v709 = vsub.f32 %v669, %v702
      %v710 = vsub.f32 %v670, %v706
      %v712 = vlaneseq
      %v713 = vshrl.u32 %v712, 7
      %v714 = vsub.s32 0, %v713
      %v715 = vrot.slane %v630, %v714
      %v716 = vlaneseq
      %v717 = vshrl.u32 %v716, 7
      %v718 = vsub.s32 1, %v717
      %v719 = vrot.slane %v630, %v718
      %v722 = vsub.f32 %v622, %v715
      %v723 = vsub.f32 %v624, %v719
      %v725 = vlaneseq
      %v726 = vshrl.u32 %v725, 7
      %v727 = vsub.s32 0, %v726
      %v728 = vrot.slane %v628, %v727
      %v729 = vlaneseq
      %v730 = vshrl.u32 %v729, 7
      %v731 = vsub.s32 1, %v730
      %v732 = vrot.slane %v628, %v731
      %v735 = vmul.f32 %v722, %v728
      %v736 = vmul.f32 %v723, %v732
      %v737 = vand.u32 2147483647, %v735
      %v738 = vand.u32 2147483647, %v736
      %vm739 = vcmp.lt.f32.partialorder %v737, 1.0
      %vm740 = vcmp.lt.f32.partialorder %v738, 1.0
      %v741 = vmul.f32 %v735, 0.5
      %v742 = vmul.f32 %v736, 0.5
      %v743 = vmul.f32 %v741, %v735
      %v744 = vmul.f32 %v742, %v736
      %v745 = vsub.f32 %v737, 0.5
      %v746 = vsub.f32 %v738, 0.5
      %v747 = vsel %vm739, %v743, %v745
      %v748 = vsel %vm740, %v744, %v746
      %v749 = vrot.slane %v622, 7
      %v750 = vrot.slane %v624, 7
      %vm753 = vcmp.gt.f32.partialorder %v622, %v749
      %vm754 = vcmp.gt.f32.partialorder %v624, %v750
      %v755 = vsel %vm753, 1, 0
      %v756 = vsel %vm754, 1, 0
      %v757 = vcvt.s32.f32 %v755
      %v758 = vcvt.s32.f32 %v756
      %vm759 = vcmp.eq.f32.partialorder %v757, %v728
      %vm760 = vcmp.eq.f32.partialorder %v758, %v732
      %v761 = vsel %vm759, 1, 0
      %v762 = vsel %vm760, 1, 0
      %v763 = vcvt.s32.f32 %v761
      %v764 = vcvt.s32.f32 %v762
      %vm765 = vcmask 1040384
      %v766 = vsel %vm765, %v709, 0.0
      %v767 = vsel %vm765, %v710, 0.0
      %v768 = vadd.f32 %v766, %v767
      %769 = vadd.xlane.f32.xlu0 %v768
      %v770 = vpop.xlane.xlu0 %769
      %vm771 = vcmask 1042434
      %v772 = vsel %vm771, %v747, 0.0
      %v773 = vsel %vm771, %v748, 0.0
      %v774 = vadd.f32 %v772, %v773
      %775 = vadd.xlane.f32.xlu0 %v774
      %v776 = vpop.xlane.xlu0 %775
      %v777 = vsel %vm771, %v737, 0.0
      %v778 = vsel %vm771, %v738, 0.0
      %v779 = vadd.f32 %v777, %v778
      %780 = vadd.xlane.f32.xlu0 %v779
      %v781 = vpop.xlane.xlu0 %780
      %v782 = vsel %vm765, %v728, 0.0
      %v783 = vsel %vm765, %v732, 0.0
      %v784 = vadd.f32 %v782, %v783
      %785 = vadd.xlane.f32.xlu0 %v784
      %v786 = vpop.xlane.xlu0 %785
      %vm787 = vcmask 1041409
      %v788 = vsel %vm787, %v763, 0.0
      %v789 = vsel %vm787, %v764, 0.0
      %v790 = vadd.f32 %v788, %v789
      %791 = vadd.xlane.f32.xlu0 %v790
      %v792 = vpop.xlane.xlu0 %791
      %v794 = vrot.slane %v776, 1
      %v797 = vrot.slane %v786, 5
      %v800 = vrot.slane %v792, 5
      %v802 = vsel %vm765, %v770, %v794
      %vm803 = vcmask 1041408
      %v804 = vsel %vm803, %v802, %v781
      %vm805 = vcmask 1042432
      %v806 = vsel %vm805, %v804, %v797
      %v807 = vsel %vm412, %v806, %v800
      %v808 = vld [vmem:[#allocation2] sm:$0x1f]
      %v809 = vadd.f32 %v808, %v807
      %vm810 = vcmask 4096
      %811 = vst.msk [vmem:[#allocation2] sm:$0x1f] %vm810, %v809
      // Predicated region
      $region45: #{tpu_custom_call.1} parent=39 // pred_check
        %p812 = pneg %p319
      $region46: #{tpu_custom_call.1} parent=39 // pred_check_branch
        %814 = sbr.rel (%p812) target = $region48
      $region47: #{tpu_custom_call.1} parent=39 // pred_region
        %v815 = vld [vmem:[#allocation2] sm:$0xff]
        %vm816 = vcmask 7168
        %817 = vst.msk [vmem:[%s317] sm:$0xff] %vm816, %v815
      $region48: #{tpu_custom_call.1} parent=39 // pred_fallthru
        _
      %p818 = scmp.lt.s32.totalorder %s21, 0
      %s819 = scalar_select %p818, %s21, 0
      %p820 = scmp.lt.s32.totalorder %s22, 1
      %s821 = scalar_select %p820, %s22, 1
      %s822 = smul.addr %s819, 2
      %s823 = sadd.s32 %s821, %s822
      %s824 = smul.addr %s823, 8
      %s825 = scalar_lea.vmem %s5, %s824
      // Predicated region
      $region49: #{tpu_custom_call.1} parent=39 // pred_check
        %p826 = pneg %p178
      $region50: #{tpu_custom_call.1} parent=39 // pred_check_branch
        %828 = sbr.rel (%p826) target = $region52
      $region51: #{tpu_custom_call.1} parent=39 // pred_region
        _
      $region52: #{tpu_custom_call.1} parent=39 // pred_fallthru
        _
    $region40: #{tpu_custom_call.1} parent=5 // pred_fallthru
      _
    %p829 = scmp.le.s32.totalorder 2, %s11
    // Predicated region
    $region53: #{tpu_custom_call.1} parent=5 // pred_check
      %p830 = pneg %p829
    $region54: #{tpu_custom_call.1} parent=5 // pred_check_branch
      %832 = sbr.rel (%p830) target = $region56
    $region55: #{tpu_custom_call.1} parent=5 // pred_region
      %s833 = ssub.s32 %s11, 2
      // Predicated region
      $region57: #{tpu_custom_call.1} parent=55 // pred_check
        %p834 = pneg %p184
      $region58: #{tpu_custom_call.1} parent=55 // pred_check_branch
        %836 = sbr.rel (%p834) target = $region60
      $region59: #{tpu_custom_call.1} parent=55 // pred_region
        %p837 = scmp.lt.s32.totalorder %s24, 0
        %s838 = scalar_select %p837, %s24, 0
        %p839 = scmp.lt.s32.totalorder %s25, 1
        %s840 = scalar_select %p839, %s25, 1
        %s841 = smul.addr %s838, 2
        %s842 = sadd.s32 %s840, %s841
        %s843 = smul.addr %s842, 8
        %s844 = scalar_lea.vmem %s5, %s843
      $region60: #{tpu_custom_call.1} parent=55 // pred_fallthru
        _
    $region56: #{tpu_custom_call.1} parent=5 // pred_fallthru
      _
  $region6: #{tpu_custom_call.1} parent=0 // loop_footer
    %s15 = sadd.s32 1, %s11
  $region7: #{tpu_custom_call.1} parent=0 // loop_footer_branch
    %10 = sbr.rel target = $region3
  $region8: #{tpu_custom_call.1} parent=0 // loop_exit
    _

</llo_original>
